<compile_context>
chip_gen: v7x
topology: tpu7x:2x2x1
jax: 0.10.0
libtpu: 0.0.40
codegen_flags: <defaults>
</compile_context>

<pallas_src>
import jax
import jax.numpy as jnp
from jax.experimental import pallas as pl
from jax.experimental.pallas import tpu as pltpu


def actor_net_kernel(x_ref,
                     w1_ref, b1_ref,
                     w2_ref, b2_ref,
                     w3_ref, b3_ref,
                     w4_ref, b4_ref,
                     o_ref):
    """One batch tile (batch on lanes) of the ActorNet forward pass."""
    x = x_ref[...]                                   # (S, TILE_B) f32
    w1 = w1_ref[...]                                 # (64, S)     f32

    # ---- Layer 1 on the VPU: K = state_size (=3) is far too shallow for the
    # MXU and sits at the head of four dependent layers.  In this layout it is
    # S outer-product FMAs: x rows are cheap sublane-broadcasts, w1 columns
    # lane-broadcast once each.
    h = b1_ref[...]                                  # (64, 1), broadcasts
    for k in range(x_ref.shape[0]):                  # unrolled at trace time
        h = h + w1[:, k:k + 1] * x[k:k + 1, :]       # (64,1)*(1,TILE_B)
    h = jnp.maximum(h, 0.0)                          # ReLU, (64, TILE_B)

    # ---- Layers 2 / 3: f32 MXU matmuls over lane-dense activations.
    h = jnp.dot(w2_ref[...], h, preferred_element_type=jnp.float32)
    h = jnp.maximum(h + b2_ref[...], 0.0)            # (32, TILE_B)

    h = jnp.dot(w3_ref[...], h, preferred_element_type=jnp.float32)
    h = jnp.maximum(h + b3_ref[...], 0.0)            # (16, TILE_B)

    # ---- Layer 4 + tanh * action_bound (tanh runs on the EUP).
    h = jnp.dot(w4_ref[...], h, preferred_element_type=jnp.float32)
    h = h + b4_ref[...]                              # (A, TILE_B)
    o_ref[...] = (jnp.tanh(h) * 2.0).astype(o_ref.dtype)


def _num_tensorcores():
    """Best-effort TensorCore count of device 0 (2 on v7x, else 1)."""
    try:
        return max(1, int(getattr(jax.devices()[0], "num_cores", 1) or 1))
    except Exception:  # pragma: no cover - defensive
        return 1


def actor_net_forward(x, params, *, n_tiles=None):
    """x: [B, state_size] (PyTorch layout).  params: kernel-layout dict with
    W_i: (out, in) f32 (= nn.Linear weight as-is) and b_i: (out, 1) f32.
    Returns [B, action_size] f32."""
    B, S = x.shape
    A = params["w4"].shape[0]

    if n_tiles is None:
        cores = _num_tensorcores()
        # 1 tile on single-TC chips (grid steps are a serial loop); even
        # per-core split on multi-TC chips when the batch is large enough.
        n_tiles = cores if (cores > 1 and B >= cores * 128) else 1
    lane_quant = 128 * n_tiles
    B_pad = ((B + lane_quant - 1) // lane_quant) * lane_quant
    tile_b = B_pad // n_tiles                        # multiple of 128

    # Batch-on-lanes input (S, B_pad): tiny fused transpose+pad.  Padded tail
    # columns produce finite garbage that is sliced off below.
    xt = jnp.pad(x.astype(jnp.float32).T, ((0, 0), (0, B_pad - B)))

    w1, b1 = params["w1"], params["b1"]
    w2, b2 = params["w2"], params["b2"]
    w3, b3 = params["w3"], params["b3"]
    w4, b4 = params["w4"], params["b4"]

    resident = lambda i: (0, 0)   # weights/biases: same block for every tile
    in_specs = [
        pl.BlockSpec((S, tile_b), lambda i: (0, i)),          # x: batch on lanes
        pl.BlockSpec(w1.shape, resident), pl.BlockSpec(b1.shape, resident),
        pl.BlockSpec(w2.shape, resident), pl.BlockSpec(b2.shape, resident),
        pl.BlockSpec(w3.shape, resident), pl.BlockSpec(b3.shape, resident),
        pl.BlockSpec(w4.shape, resident), pl.BlockSpec(b4.shape, resident),
    ]
    out_specs = pl.BlockSpec((A, tile_b), lambda i: (0, i))   # lane-dense slab

    flops = 2 * B_pad * (S * 64 + 64 * 32 + 32 * 16 + 16 * A)
    bytes_accessed = 4 * (xt.size + w1.size + w2.size + w3.size + w4.size
                          + b1.size + b2.size + b3.size + b4.size + A * B_pad)
    cost = pl.CostEstimate(flops=flops, transcendentals=B_pad * A,
                           bytes_accessed=bytes_accessed)

    out = pl.pallas_call(
        actor_net_kernel,
        out_shape=jax.ShapeDtypeStruct((A, B_pad), jnp.float32),
        grid=(n_tiles,),
        in_specs=in_specs,
        out_specs=out_specs,
        compiler_params=pltpu.CompilerParams(
            dimension_semantics=("parallel",)),
        cost_estimate=cost,
    )(xt, w1, b1, w2, b2, w3, b3, w4, b4)

    return out[:, :B].T                              # (B, A)


def init_params(key, state_size, action_size):
    """PyTorch-style uniform(+-1/sqrt(fan_in)) init, already in kernel layout:
    W_i: (out, in) f32 (identical to nn.Linear.weight), b_i: (out, 1) f32
    (= nn.Linear.bias[:, None])."""
    dims = [(state_size, 64), (64, 32), (32, 16), (16, action_size)]
    params = {}
    for i, (fan_in, fan_out) in enumerate(dims, start=1):
        key, kw, kb = jax.random.split(key, 3)
        bound = 1.0 / (fan_in ** 0.5)
        params[f"w{i}"] = jax.random.uniform(
            kw, (fan_out, fan_in), jnp.float32, -bound, bound)
        params[f"b{i}"] = jax.random.uniform(
            kb, (fan_out, 1), jnp.float32, -bound, bound)
    return params


def reference_forward(x, params):
    """Pure-f32 reference matching the PyTorch module (highest precision)."""
    hi = jax.lax.Precision.HIGHEST
    h = jnp.maximum(jnp.dot(x, params["w1"].T, precision=hi) + params["b1"].T, 0.0)
    h = jnp.maximum(jnp.dot(h, params["w2"].T, precision=hi) + params["b2"].T, 0.0)
    h = jnp.maximum(jnp.dot(h, params["w3"].T, precision=hi) + params["b3"].T, 0.0)
    return jnp.tanh(jnp.dot(h, params["w4"].T, precision=hi) + params["b4"].T) * 2.0


if __name__ == "__main__":
    # Pendulum-v1: state_size=3, action_size=1.
    state_size, action_size = 3, 1
    key = jax.random.PRNGKey(0)
    key, kp = jax.random.split(key)
    params = init_params(kp, state_size, action_size)

    # Case 1: tiny inference batch (single 128-lane tile, grid=(1,)).
    key, kx = jax.random.split(key)
    x_small = jax.random.normal(kx, (8, state_size), jnp.float32)
    out_small = jax.block_until_ready(actor_net_forward(x_small, params))
    assert out_small.shape == (8, action_size)
    assert jnp.allclose(out_small, reference_forward(x_small, params),
                        atol=1e-3, rtol=1e-3)

    # Case 2: batch that is not a multiple of 128 -> exercises padding and
    # (on multi-core chips) the per-core batch split.
    key, kx = jax.random.split(key)
    x_big = jax.random.normal(kx, (300, state_size), jnp.float32)
    out_big = jax.block_until_ready(actor_net_forward(x_big, params))
    assert out_big.shape == (300, action_size)
    assert jnp.allclose(out_big, reference_forward(x_big, params),
                        atol=1e-3, rtol=1e-3)

    # Case 3: explicitly force a 2-tile grid (exercises the tiled/resident
    # weight path even on single-TensorCore chips).
    out_big2 = jax.block_until_ready(actor_net_forward(x_big, params, n_tiles=2))
    assert out_big2.shape == (300, action_size)
    assert jnp.allclose(out_big2, out_big, atol=1e-5, rtol=1e-5)

    print("KERNEL_OK")
</pallas_src>

<mosaic_0001>
module attributes {stable_mosaic.version = 11 : i64} {
  func.func @actor_net_kernel(%arg0: i32, %arg1: memref<3x128xf32, #tpu.memory_space<vmem>>, %arg2: memref<64x3xf32, #tpu.memory_space<vmem>>, %arg3: memref<64x1xf32, #tpu.memory_space<vmem>>, %arg4: memref<32x64xf32, #tpu.memory_space<vmem>>, %arg5: memref<32x1xf32, #tpu.memory_space<vmem>>, %arg6: memref<16x32xf32, #tpu.memory_space<vmem>>, %arg7: memref<16x1xf32, #tpu.memory_space<vmem>>, %arg8: memref<1x16xf32, #tpu.memory_space<vmem>>, %arg9: memref<1x1xf32, #tpu.memory_space<vmem>>, %arg10: memref<1x128xf32, #tpu.memory_space<vmem>>) attributes {dimension_semantics = [#tpu.dimension_semantics<parallel>], iteration_bounds = array<i64: 1>, scalar_prefetch = 0 : i64, scratch_operands = 0 : i64, tpu.core_type = #tpu.core_type<tc>, window_params = [{transform_indices = @transform_0, window_bounds = array<i64: 3, 128>}, {pipeline_mode = #tpu.pipeline_mode<synchronous>, transform_indices = @transform_1, window_bounds = array<i64: 64, 3>}, {pipeline_mode = #tpu.pipeline_mode<synchronous>, transform_indices = @transform_2, window_bounds = array<i64: 64, 1>}, {pipeline_mode = #tpu.pipeline_mode<synchronous>, transform_indices = @transform_3, window_bounds = array<i64: 32, 64>}, {pipeline_mode = #tpu.pipeline_mode<synchronous>, transform_indices = @transform_4, window_bounds = array<i64: 32, 1>}, {pipeline_mode = #tpu.pipeline_mode<synchronous>, transform_indices = @transform_5, window_bounds = array<i64: 16, 32>}, {pipeline_mode = #tpu.pipeline_mode<synchronous>, transform_indices = @transform_6, window_bounds = array<i64: 16, 1>}, {pipeline_mode = #tpu.pipeline_mode<synchronous>, transform_indices = @transform_7, window_bounds = array<i64: 1, 16>}, {pipeline_mode = #tpu.pipeline_mode<synchronous>, transform_indices = @transform_8, window_bounds = array<i64: 1, 1>}, {transform_indices = @transform_9, window_bounds = array<i64: 1, 128>}]} {
    %c0 = arith.constant 0 : index
    %c0_0 = arith.constant 0 : index
    %0 = vector.load %arg1[%c0, %c0_0] : memref<3x128xf32, #tpu.memory_space<vmem>>, vector<3x128xf32>
    %c0_1 = arith.constant 0 : index
    %c0_2 = arith.constant 0 : index
    %1 = vector.load %arg2[%c0_1, %c0_2] : memref<64x3xf32, #tpu.memory_space<vmem>>, vector<64x3xf32>
    %c0_3 = arith.constant 0 : index
    %c0_4 = arith.constant 0 : index
    %2 = vector.load %arg3[%c0_3, %c0_4] : memref<64x1xf32, #tpu.memory_space<vmem>>, vector<64x1xf32>
    %3 = vector.extract_strided_slice %1 {offsets = [0, 0], sizes = [64, 1], strides = [1, 1]} : vector<64x3xf32> to vector<64x1xf32>
    %4 = vector.extract_strided_slice %0 {offsets = [0, 0], sizes = [1, 128], strides = [1, 1]} : vector<3x128xf32> to vector<1x128xf32>
    %5 = vector.broadcast %3 : vector<64x1xf32> to vector<64x128xf32>
    %6 = vector.broadcast %4 : vector<1x128xf32> to vector<64x128xf32>
    %7 = arith.mulf %5, %6 : vector<64x128xf32>
    %8 = vector.broadcast %2 : vector<64x1xf32> to vector<64x128xf32>
    %9 = arith.addf %8, %7 : vector<64x128xf32>
    %10 = vector.extract_strided_slice %1 {offsets = [0, 1], sizes = [64, 1], strides = [1, 1]} : vector<64x3xf32> to vector<64x1xf32>
    %11 = vector.extract_strided_slice %0 {offsets = [1, 0], sizes = [1, 128], strides = [1, 1]} : vector<3x128xf32> to vector<1x128xf32>
    %12 = vector.broadcast %10 : vector<64x1xf32> to vector<64x128xf32>
    %13 = vector.broadcast %11 : vector<1x128xf32> to vector<64x128xf32>
    %14 = arith.mulf %12, %13 : vector<64x128xf32>
    %15 = arith.addf %9, %14 : vector<64x128xf32>
    %16 = vector.extract_strided_slice %1 {offsets = [0, 2], sizes = [64, 1], strides = [1, 1]} : vector<64x3xf32> to vector<64x1xf32>
    %17 = vector.extract_strided_slice %0 {offsets = [2, 0], sizes = [1, 128], strides = [1, 1]} : vector<3x128xf32> to vector<1x128xf32>
    %18 = vector.broadcast %16 : vector<64x1xf32> to vector<64x128xf32>
    %19 = vector.broadcast %17 : vector<1x128xf32> to vector<64x128xf32>
    %20 = arith.mulf %18, %19 : vector<64x128xf32>
    %21 = arith.addf %15, %20 : vector<64x128xf32>
    %cst = arith.constant 0.000000e+00 : f32
    %22 = vector.broadcast %cst : f32 to vector<64x128xf32>
    %23 = arith.maximumf %21, %22 : vector<64x128xf32>
    %c0_5 = arith.constant 0 : index
    %c0_6 = arith.constant 0 : index
    %24 = vector.load %arg4[%c0_5, %c0_6] : memref<32x64xf32, #tpu.memory_space<vmem>>, vector<32x64xf32>
    %cst_7 = arith.constant dense<0.000000e+00> : vector<32x128xf32>
    %25 = tpu.matmul %24, %23, %cst_7 {dimension_numbers = #tpu.dot_dimension_numbers<[1], [0], [0], [1], [0, 0, 1, 1], [], []>} : vector<32x64xf32>, vector<64x128xf32>, vector<32x128xf32> -> vector<32x128xf32>
    %c0_8 = arith.constant 0 : index
    %c0_9 = arith.constant 0 : index
    %26 = vector.load %arg5[%c0_8, %c0_9] : memref<32x1xf32, #tpu.memory_space<vmem>>, vector<32x1xf32>
    %27 = vector.broadcast %26 : vector<32x1xf32> to vector<32x128xf32>
    %28 = arith.addf %25, %27 : vector<32x128xf32>
    %cst_10 = arith.constant 0.000000e+00 : f32
    %29 = vector.broadcast %cst_10 : f32 to vector<32x128xf32>
    %30 = arith.maximumf %28, %29 : vector<32x128xf32>
    %c0_11 = arith.constant 0 : index
    %c0_12 = arith.constant 0 : index
    %31 = vector.load %arg6[%c0_11, %c0_12] : memref<16x32xf32, #tpu.memory_space<vmem>>, vector<16x32xf32>
    %cst_13 = arith.constant dense<0.000000e+00> : vector<16x128xf32>
    %32 = tpu.matmul %31, %30, %cst_13 {dimension_numbers = #tpu.dot_dimension_numbers<[1], [0], [0], [1], [0, 0, 1, 1], [], []>} : vector<16x32xf32>, vector<32x128xf32>, vector<16x128xf32> -> vector<16x128xf32>
    %c0_14 = arith.constant 0 : index
    %c0_15 = arith.constant 0 : index
    %33 = vector.load %arg7[%c0_14, %c0_15] : memref<16x1xf32, #tpu.memory_space<vmem>>, vector<16x1xf32>
    %34 = vector.broadcast %33 : vector<16x1xf32> to vector<16x128xf32>
    %35 = arith.addf %32, %34 : vector<16x128xf32>
    %cst_16 = arith.constant 0.000000e+00 : f32
    %36 = vector.broadcast %cst_16 : f32 to vector<16x128xf32>
    %37 = arith.maximumf %35, %36 : vector<16x128xf32>
    %c0_17 = arith.constant 0 : index
    %c0_18 = arith.constant 0 : index
    %38 = vector.load %arg8[%c0_17, %c0_18] : memref<1x16xf32, #tpu.memory_space<vmem>>, vector<1x16xf32>
    %cst_19 = arith.constant dense<0.000000e+00> : vector<1x128xf32>
    %39 = tpu.matmul %38, %37, %cst_19 {dimension_numbers = #tpu.dot_dimension_numbers<[1], [0], [0], [1], [0, 0, 1, 1], [], []>} : vector<1x16xf32>, vector<16x128xf32>, vector<1x128xf32> -> vector<1x128xf32>
    %c0_20 = arith.constant 0 : index
    %c0_21 = arith.constant 0 : index
    %40 = vector.load %arg9[%c0_20, %c0_21] : memref<1x1xf32, #tpu.memory_space<vmem>>, vector<1x1xf32>
    %41 = vector.broadcast %40 : vector<1x1xf32> to vector<1x128xf32>
    %42 = arith.addf %39, %41 : vector<1x128xf32>
    %43 = math.tanh %42 : vector<1x128xf32>
    %cst_22 = arith.constant 2.000000e+00 : f32
    %44 = vector.broadcast %cst_22 : f32 to vector<1x128xf32>
    %45 = arith.mulf %43, %44 : vector<1x128xf32>
    %c0_23 = arith.constant 0 : index
    %c0_24 = arith.constant 0 : index
    %46 = vector.load %arg10[%c0_23, %c0_24] : memref<1x128xf32, #tpu.memory_space<vmem>>, vector<1x128xf32>
    tpu.vector_store %arg10[%c0_23, %c0_24], %45 {strides = array<i32>} : memref<1x128xf32, #tpu.memory_space<vmem>>, vector<1x128xf32>,
    return
  }
  func.func @transform_0(%arg0: i32) -> (i32, i32) {
    %c0_i32 = arith.constant 0 : i32
    %c0_i32_0 = arith.constant 0 : i32
    return %c0_i32, %arg0 : i32, i32
  }
  func.func @transform_1(%arg0: i32) -> (i32, i32) {
    %c0_i32 = arith.constant 0 : i32
    %c0_i32_0 = arith.constant 0 : i32
    %c0_i32_1 = arith.constant 0 : i32
    return %c0_i32, %c0_i32_0 : i32, i32
  }
  func.func @transform_2(%arg0: i32) -> (i32, i32) {
    %c0_i32 = arith.constant 0 : i32
    %c0_i32_0 = arith.constant 0 : i32
    %c0_i32_1 = arith.constant 0 : i32
    return %c0_i32, %c0_i32_0 : i32, i32
  }
  func.func @transform_3(%arg0: i32) -> (i32, i32) {
    %c0_i32 = arith.constant 0 : i32
    %c0_i32_0 = arith.constant 0 : i32
    %c0_i32_1 = arith.constant 0 : i32
    return %c0_i32, %c0_i32_0 : i32, i32
  }
  func.func @transform_4(%arg0: i32) -> (i32, i32) {
    %c0_i32 = arith.constant 0 : i32
    %c0_i32_0 = arith.constant 0 : i32
    %c0_i32_1 = arith.constant 0 : i32
    return %c0_i32, %c0_i32_0 : i32, i32
  }
  func.func @transform_5(%arg0: i32) -> (i32, i32) {
    %c0_i32 = arith.constant 0 : i32
    %c0_i32_0 = arith.constant 0 : i32
    %c0_i32_1 = arith.constant 0 : i32
    return %c0_i32, %c0_i32_0 : i32, i32
  }
  func.func @transform_6(%arg0: i32) -> (i32, i32) {
    %c0_i32 = arith.constant 0 : i32
    %c0_i32_0 = arith.constant 0 : i32
    %c0_i32_1 = arith.constant 0 : i32
    return %c0_i32, %c0_i32_0 : i32, i32
  }
  func.func @transform_7(%arg0: i32) -> (i32, i32) {
    %c0_i32 = arith.constant 0 : i32
    %c0_i32_0 = arith.constant 0 : i32
    %c0_i32_1 = arith.constant 0 : i32
    return %c0_i32, %c0_i32_0 : i32, i32
  }
  func.func @transform_8(%arg0: i32) -> (i32, i32) {
    %c0_i32 = arith.constant 0 : i32
    %c0_i32_0 = arith.constant 0 : i32
    %c0_i32_1 = arith.constant 0 : i32
    return %c0_i32, %c0_i32_0 : i32, i32
  }
  func.func @transform_9(%arg0: i32) -> (i32, i32) {
    %c0_i32 = arith.constant 0 : i32
    %c0_i32_0 = arith.constant 0 : i32
    return %c0_i32, %arg0 : i32, i32
  }
}

</mosaic_0001>

<llo_original>
// kernel: tpu_custom_call.1
$region0: #{tpu_custom_call.1}
  #allocation0 [shape = 'u32[]', space=smem, size = 0x4, offset = 0x4, fixed_abs, tag = 'smem constant byte address 0x4 - core index']
  #allocation1 [shape = 'u32[144,128]{1,0:T(1,128)}', space=vmem, size = 0x12000, scoped, tag = 'internal scratch']
  #allocation2 [shape = 'f32[1,1]{1,0:T(1,128)S(1)}', space=vmem, size = 0x200, scoped, tag = 'scoped memory for tpu_custom_call.1']
  %s0 = inlined_call_operand.vmem [shape: f32[3,128], index: 0, kind: input, shape index: {}]
  %s1 = inlined_call_operand.vmem [shape: f32[64,3], index: 1, kind: input, shape index: {}]
  %s2 = inlined_call_operand.vmem [shape: f32[64,1], index: 2, kind: input, shape index: {}]
  %s3 = inlined_call_operand.vmem [shape: f32[32,64], index: 3, kind: input, shape index: {}]
  %s4 = inlined_call_operand.vmem [shape: f32[32,1], index: 4, kind: input, shape index: {}]
  %s5 = inlined_call_operand.vmem [shape: f32[16,32], index: 5, kind: input, shape index: {}]
  %s6 = inlined_call_operand.vmem [shape: f32[16,1], index: 6, kind: input, shape index: {}]
  %s7 = inlined_call_operand.vmem [shape: f32[1,16], index: 7, kind: input, shape index: {}]
  %s8 = inlined_call_operand.<no memory space> [shape: f32[1,1], index: 8, kind: input, shape index: {}]
  %s9 = inlined_call_operand.hbm [shape: f32[1,128], index: 9, kind: output, shape index: {}]
  %s10 = sld [smem:[#allocation0]]
  $region46: #{tpu_custom_call.1} parent=0
    _
  %s12 = ssub.s32 1, %s10
  %s13 = scalar_select 0, %s12, %s10
  %v14 = vstv %s8
  %15 = vst [vmem:[#allocation2] sm:$0x1] %v14
  $region1: #{tpu_custom_call.1} parent=0
    #allocation3 [shape = 'u8[512]{0}', space=vmem, size = 0x400, scoped, tag = 'output window, operand 0, single buffered']
    #allocation4 [shape = 's32[1]{0}', space=sflag, size = 0x4, scoped, tag = 'scoped memory for tpu_custom_call.1']
    %16 = vsyncpa [#allocation4], 0
    // Predicated region
    $region2: #{tpu_custom_call.1} parent=1 // pred_check
      _
    $region3: #{tpu_custom_call.1} parent=1 // pred_check_branch
      %18 = sbr.rel (0) target = $region5
    $region4: #{tpu_custom_call.1} parent=1 // pred_region
      _
    $region5: #{tpu_custom_call.1} parent=1 // pred_fallthru
      _
    // Predicated region
    $region6: #{tpu_custom_call.1} parent=1 // pred_check
      _
    $region7: #{tpu_custom_call.1} parent=1 // pred_check_branch
      %20 = sbr.rel (0) target = $region9
    $region8: #{tpu_custom_call.1} parent=1 // pred_region
      _
    $region9: #{tpu_custom_call.1} parent=1 // pred_fallthru
      _
    // Predicated region
    $region10: #{tpu_custom_call.1} parent=1 // pred_check
      _
    $region11: #{tpu_custom_call.1} parent=1 // pred_check_branch
      %22 = sbr.rel (0) target = $region13
    $region12: #{tpu_custom_call.1} parent=1 // pred_region
      _
    $region13: #{tpu_custom_call.1} parent=1 // pred_fallthru
      _
    // Predicated region
    $region14: #{tpu_custom_call.1} parent=1 // pred_check
      _
    $region15: #{tpu_custom_call.1} parent=1 // pred_check_branch
      %24 = sbr.rel (0) target = $region17
    $region16: #{tpu_custom_call.1} parent=1 // pred_region
      _
    $region17: #{tpu_custom_call.1} parent=1 // pred_fallthru
      _
    // Predicated region
    $region18: #{tpu_custom_call.1} parent=1 // pred_check
      _
    $region19: #{tpu_custom_call.1} parent=1 // pred_check_branch
      %26 = sbr.rel (0) target = $region21
    $region20: #{tpu_custom_call.1} parent=1 // pred_region
      _
    $region21: #{tpu_custom_call.1} parent=1 // pred_fallthru
      _
    // Predicated region
    $region22: #{tpu_custom_call.1} parent=1 // pred_check
      _
    $region23: #{tpu_custom_call.1} parent=1 // pred_check_branch
      %28 = sbr.rel (0) target = $region25
    $region24: #{tpu_custom_call.1} parent=1 // pred_region
      _
    $region25: #{tpu_custom_call.1} parent=1 // pred_fallthru
      _
    // Predicated region
    $region26: #{tpu_custom_call.1} parent=1 // pred_check
      _
    $region27: #{tpu_custom_call.1} parent=1 // pred_check_branch
      %30 = sbr.rel (0) target = $region29
    $region28: #{tpu_custom_call.1} parent=1 // pred_region
      _
    $region29: #{tpu_custom_call.1} parent=1 // pred_fallthru
      _
    // Predicated region
    $region30: #{tpu_custom_call.1} parent=1 // pred_check
      _
    $region31: #{tpu_custom_call.1} parent=1 // pred_check_branch
      %32 = sbr.rel (0) target = $region33
    $region32: #{tpu_custom_call.1} parent=1 // pred_region
      _
    $region33: #{tpu_custom_call.1} parent=1 // pred_fallthru
      _
    // Predicated region
    $region34: #{tpu_custom_call.1} parent=1 // pred_check
      _
    $region35: #{tpu_custom_call.1} parent=1 // pred_check_branch
      %34 = sbr.rel (0) target = $region37
    $region36: #{tpu_custom_call.1} parent=1 // pred_region
      _
    $region37: #{tpu_custom_call.1} parent=1 // pred_fallthru
      _
    %v35 = vld [vmem:[%s0] sm:$0x7]
    %v36 = vld [vmem:[%s1] sm:$0xff]
    %v37 = vld [vmem:[%s1 + $0x8] sm:$0xff]
    %v38 = vld [vmem:[%s1 + $0x10] sm:$0xff]
    %v39 = vld [vmem:[%s1 + $0x18] sm:$0xff]
    %v40 = vld [vmem:[%s1 + $0x20] sm:$0xff]
    %v41 = vld [vmem:[%s1 + $0x28] sm:$0xff]
    %v42 = vld [vmem:[%s1 + $0x30] sm:$0xff]
    %v43 = vld [vmem:[%s1 + $0x38] sm:$0xff]
    %v44 = vld [vmem:[%s2] sm:$0xff]
    %v45 = vld [vmem:[%s2 + $0x8] sm:$0xff]
    %v46 = vld [vmem:[%s2 + $0x10] sm:$0xff]
    %v47 = vld [vmem:[%s2 + $0x18] sm:$0xff]
    %v48 = vld [vmem:[%s2 + $0x20] sm:$0xff]
    %v49 = vld [vmem:[%s2 + $0x28] sm:$0xff]
    %v50 = vld [vmem:[%s2 + $0x30] sm:$0xff]
    %v51 = vld [vmem:[%s2 + $0x38] sm:$0xff]
    %53 = vset.pattern.permute.xlu0 0
    %54 = vperm.xlu0 %53, %v36
    %v55 = vpop.permute.xlu0 %54
    %58 = vset.pattern.permute.xlu0 0
    %59 = vperm.xlu0 %58, %v37
    %v60 = vpop.permute.xlu0 %59
    %63 = vset.pattern.permute.xlu0 0
    %64 = vperm.xlu0 %63, %v38
    %v65 = vpop.permute.xlu0 %64
    %68 = vset.pattern.permute.xlu0 0
    %69 = vperm.xlu0 %68, %v39
    %v70 = vpop.permute.xlu0 %69
    %73 = vset.pattern.permute.xlu0 0
    %74 = vperm.xlu0 %73, %v40
    %v75 = vpop.permute.xlu0 %74
    %78 = vset.pattern.permute.xlu0 0
    %79 = vperm.xlu0 %78, %v41
    %v80 = vpop.permute.xlu0 %79
    %83 = vset.pattern.permute.xlu0 0
    %84 = vperm.xlu0 %83, %v42
    %v85 = vpop.permute.xlu0 %84
    %88 = vset.pattern.permute.xlu0 0
    %89 = vperm.xlu0 %88, %v43
    %v90 = vpop.permute.xlu0 %89
    %v92 = vlaneseq
    %v93 = vshrl.u32 %v92, 7
    %v94 = vsub.s32 0, %v93
    %v95 = vrot.slane %v35, %v94
    %v96 = vmul.f32 %v55, %v95
    %v97 = vmul.f32 %v60, %v95
    %v98 = vmul.f32 %v65, %v95
    %v99 = vmul.f32 %v70, %v95
    %v100 = vmul.f32 %v75, %v95
    %v101 = vmul.f32 %v80, %v95
    %v102 = vmul.f32 %v85, %v95
    %v103 = vmul.f32 %v90, %v95
    %105 = vset.pattern.permute.xlu0 0
    %106 = vperm.xlu0 %105, %v44
    %v107 = vpop.permute.xlu0 %106
    %110 = vset.pattern.permute.xlu0 0
    %111 = vperm.xlu0 %110, %v45
    %v112 = vpop.permute.xlu0 %111
    %115 = vset.pattern.permute.xlu0 0
    %116 = vperm.xlu0 %115, %v46
    %v117 = vpop.permute.xlu0 %116
    %120 = vset.pattern.permute.xlu0 0
    %121 = vperm.xlu0 %120, %v47
    %v122 = vpop.permute.xlu0 %121
    %125 = vset.pattern.permute.xlu0 0
    %126 = vperm.xlu0 %125, %v48
    %v127 = vpop.permute.xlu0 %126
    %130 = vset.pattern.permute.xlu0 0
    %131 = vperm.xlu0 %130, %v49
    %v132 = vpop.permute.xlu0 %131
    %135 = vset.pattern.permute.xlu0 0
    %136 = vperm.xlu0 %135, %v50
    %v137 = vpop.permute.xlu0 %136
    %140 = vset.pattern.permute.xlu0 0
    %141 = vperm.xlu0 %140, %v51
    %v142 = vpop.permute.xlu0 %141
    %v144 = vadd.f32 %v107, %v96
    %v145 = vadd.f32 %v112, %v97
    %v146 = vadd.f32 %v117, %v98
    %v147 = vadd.f32 %v122, %v99
    %v148 = vadd.f32 %v127, %v100
    %v149 = vadd.f32 %v132, %v101
    %v150 = vadd.f32 %v137, %v102
    %v151 = vadd.f32 %v142, %v103
    %152 = vset.pattern.permute.xlu0 1
    %153 = vperm.xlu0 %152, %v36
    %v154 = vpop.permute.xlu0 %153
    %156 = vset.pattern.permute.xlu0 1
    %157 = vperm.xlu0 %156, %v37
    %v158 = vpop.permute.xlu0 %157
    %160 = vset.pattern.permute.xlu0 1
    %161 = vperm.xlu0 %160, %v38
    %v162 = vpop.permute.xlu0 %161
    %164 = vset.pattern.permute.xlu0 1
    %165 = vperm.xlu0 %164, %v39
    %v166 = vpop.permute.xlu0 %165
    %168 = vset.pattern.permute.xlu0 1
    %169 = vperm.xlu0 %168, %v40
    %v170 = vpop.permute.xlu0 %169
    %172 = vset.pattern.permute.xlu0 1
    %173 = vperm.xlu0 %172, %v41
    %v174 = vpop.permute.xlu0 %173
    %176 = vset.pattern.permute.xlu0 1
    %177 = vperm.xlu0 %176, %v42
    %v178 = vpop.permute.xlu0 %177
    %180 = vset.pattern.permute.xlu0 1
    %181 = vperm.xlu0 %180, %v43
    %v182 = vpop.permute.xlu0 %181
    %v184 = vlaneseq
    %v185 = vshrl.u32 %v184, 7
    %v186 = vsub.s32 1, %v185
    %v187 = vrot.slane %v35, %v186
    %v188 = vmul.f32 %v154, %v187
    %v189 = vmul.f32 %v158, %v187
    %v190 = vmul.f32 %v162, %v187
    %v191 = vmul.f32 %v166, %v187
    %v192 = vmul.f32 %v170, %v187
    %v193 = vmul.f32 %v174, %v187
    %v194 = vmul.f32 %v178, %v187
    %v195 = vmul.f32 %v182, %v187
    %v196 = vadd.f32 %v144, %v188
    %v197 = vadd.f32 %v145, %v189
    %v198 = vadd.f32 %v146, %v190
    %v199 = vadd.f32 %v147, %v191
    %v200 = vadd.f32 %v148, %v192
    %v201 = vadd.f32 %v149, %v193
    %v202 = vadd.f32 %v150, %v194
    %v203 = vadd.f32 %v151, %v195
    %204 = vset.pattern.permute.xlu0 2
    %205 = vperm.xlu0 %204, %v36
    %v206 = vpop.permute.xlu0 %205
    %208 = vset.pattern.permute.xlu0 2
    %209 = vperm.xlu0 %208, %v37
    %v210 = vpop.permute.xlu0 %209
    %212 = vset.pattern.permute.xlu0 2
    %213 = vperm.xlu0 %212, %v38
    %v214 = vpop.permute.xlu0 %213
    %216 = vset.pattern.permute.xlu0 2
    %217 = vperm.xlu0 %216, %v39
    %v218 = vpop.permute.xlu0 %217
    %220 = vset.pattern.permute.xlu0 2
    %221 = vperm.xlu0 %220, %v40
    %v222 = vpop.permute.xlu0 %221
    %224 = vset.pattern.permute.xlu0 2
    %225 = vperm.xlu0 %224, %v41
    %v226 = vpop.permute.xlu0 %225
    %228 = vset.pattern.permute.xlu0 2
    %229 = vperm.xlu0 %228, %v42
    %v230 = vpop.permute.xlu0 %229
    %232 = vset.pattern.permute.xlu0 2
    %233 = vperm.xlu0 %232, %v43
    %v234 = vpop.permute.xlu0 %233
    %v236 = vlaneseq
    %v237 = vshrl.u32 %v236, 7
    %v238 = vsub.s32 2, %v237
    %v239 = vrot.slane %v35, %v238
    %v240 = vmul.f32 %v206, %v239
    %v241 = vmul.f32 %v210, %v239
    %v242 = vmul.f32 %v214, %v239
    %v243 = vmul.f32 %v218, %v239
    %v244 = vmul.f32 %v222, %v239
    %v245 = vmul.f32 %v226, %v239
    %v246 = vmul.f32 %v230, %v239
    %v247 = vmul.f32 %v234, %v239
    %v248 = vadd.f32 %v196, %v240
    %v249 = vadd.f32 %v197, %v241
    %v250 = vadd.f32 %v198, %v242
    %v251 = vadd.f32 %v199, %v243
    %v252 = vadd.f32 %v200, %v244
    %v253 = vadd.f32 %v201, %v245
    %v254 = vadd.f32 %v202, %v246
    %v255 = vadd.f32 %v203, %v247
    %v256 = vmax.f32 %v248, 0.0
    %v257 = vmax.f32 %v249, 0.0
    %v258 = vmax.f32 %v250, 0.0
    %v259 = vmax.f32 %v251, 0.0
    %v260 = vmax.f32 %v252, 0.0
    %v261 = vmax.f32 %v253, 0.0
    %v262 = vmax.f32 %v254, 0.0
    %v263 = vmax.f32 %v255, 0.0
    %v264 = vld [vmem:[%s3] sm:$0xff]
    %v265 = vld [vmem:[%s3 + $0x8] sm:$0xff]
    %v266 = vld [vmem:[%s3 + $0x10] sm:$0xff]
    %v267 = vld [vmem:[%s3 + $0x18] sm:$0xff]
    %v268 = vld [vmem:[%s4] sm:$0xff]
    %v269 = vld [vmem:[%s4 + $0x8] sm:$0xff]
    %v270 = vld [vmem:[%s4 + $0x10] sm:$0xff]
    %v271 = vld [vmem:[%s4 + $0x18] sm:$0xff]
    %273 = vset.pattern.permute.xlu0 0
    %274 = vperm.xlu0 %273, %v268
    %v275 = vpop.permute.xlu0 %274
    %278 = vset.pattern.permute.xlu0 0
    %279 = vperm.xlu0 %278, %v269
    %v280 = vpop.permute.xlu0 %279
    %283 = vset.pattern.permute.xlu0 0
    %284 = vperm.xlu0 %283, %v270
    %v285 = vpop.permute.xlu0 %284
    %288 = vset.pattern.permute.xlu0 0
    %289 = vperm.xlu0 %288, %v271
    %v290 = vpop.permute.xlu0 %289
    %vm292 = vcmask 523264
    %v294 = vsel %vm292, %v264, 0
    %v297 = vsel %vm292, %v265, 0
    %v300 = vsel %vm292, %v266, 0
    %v303 = vsel %vm292, %v267, 0
    %305 = vmatprep.subr.mxu0 0.0
    %306 = vmatpush1.msra.mxu0 %v256
    %307 = vmatprep.subr.mxu0 0.0
    %308 = vmatpush1.msra.mxu0 %v257
    %309 = vmatprep.subr.mxu0 0.0
    %310 = vmatpush1.msra.mxu0 %v258
    %311 = vmatprep.subr.mxu0 0.0
    %312 = vmatpush1.msra.mxu0 %v259
    %313 = vmatprep.subr.mxu0 0.0
    %314 = vmatpush1.msra.mxu0 %v260
    %315 = vmatprep.subr.mxu0 0.0
    %316 = vmatpush1.msra.mxu0 %v261
    %317 = vmatprep.subr.mxu0 0.0
    %318 = vmatpush1.msra.mxu0 %v262
    %319 = vmatprep.subr.mxu0 0.0
    %320 = vmatpush1.msra.mxu0 %v263
    %321 = vmatprep.subr.mxu0 0.0
    %322 = vmatpush1.msra.mxu0 0.0
    %323 = vmatprep.subr.mxu0 0.0
    %324 = vmatpush1.msra.mxu0 0.0
    %325 = vmatprep.subr.mxu0 0.0
    %326 = vmatpush1.msra.mxu0 0.0
    %327 = vmatprep.subr.mxu0 0.0
    %328 = vmatpush1.msra.mxu0 0.0
    %329 = vmatprep.subr.mxu0 0.0
    %330 = vmatpush1.msra.mxu0 0.0
    %331 = vmatprep.subr.mxu0 0.0
    %332 = vmatpush1.msra.mxu0 0.0
    %333 = vmatprep.subr.mxu0 0.0
    %334 = vmatpush1.msra.mxu0 0.0
    %335 = vmatprep.subr.mxu0 0.0
    %336 = vmatpush1.msra.mxu0 0.0
    %337 = vmatprep.subr.mxu0 0.0
    %338 = vmatpush1.msra.mxu0 0.0
    %339 = vmatprep.subr.mxu0 0.0
    %340 = vmatpush1.msra.mxu0 0.0
    %341 = vmatprep.subr.mxu0 0.0
    %342 = vmatpush1.msra.mxu0 0.0
    %343 = vmatprep.subr.mxu0 0.0
    %344 = vmatpush1.msra.mxu0 0.0
    %345 = vmatprep.subr.mxu0 0.0
    %346 = vmatpush1.msra.mxu0 0.0
    %347 = vmatprep.subr.mxu0 0.0
    %348 = vmatpush1.msra.mxu0 0.0
    %349 = vmatprep.subr.mxu0 0.0
    %350 = vmatpush1.msra.mxu0 0.0
    %351 = vmatprep.subr.mxu0 0.0
    %352 = vmatpush1.msra.mxu0 0.0
    %353 = vmatprep.subr.mxu0 0.0
    %354 = vmatpush1.msra.mxu0 0.0
    %355 = vmatprep.subr.mxu0 0.0
    %356 = vmatpush1.msra.mxu0 0.0
    %357 = vmatprep.subr.mxu0 0.0
    %358 = vmatpush1.msra.mxu0 0.0
    %359 = vmatprep.subr.mxu0 0.0
    %360 = vmatpush1.msra.mxu0 0.0
    %361 = vmatprep.subr.mxu0 0.0
    %362 = vmatpush1.msra.mxu0 0.0
    %363 = vmatprep.subr.mxu0 0.0
    %364 = vmatpush1.msra.mxu0 0.0
    %365 = vmatprep.subr.mxu0 0.0
    %366 = vmatpush1.msra.mxu0 0.0
    %367 = vmatprep.subr.mxu0 0.0
    %368 = vmatpush1.msra.mxu0 0.0
    %369 = vmatprep.mubr.f32.mxu0 0.0
    %370 = vmatmul.mubr.f32.gmra.mrb[0].mxu0 %v294
    %v371 = vpop.f32.mrb[0].mxu0
    %v372 = vadd.f32 %v275, %v371
    %v373 = vpop.f32.mrb[0].mxu0
    %374 = vmatprep.mubr.f32.mxu0 0.0
    %375 = vmatmul.mubr.f32.gmra.mrb[0].mxu0 %v297
    %v376 = vpop.f32.mrb[0].mxu0
    %v377 = vadd.f32 %v280, %v376
    %v378 = vpop.f32.mrb[0].mxu0
    %379 = vmatprep.mubr.f32.mxu0 0.0
    %380 = vmatmul.mubr.f32.gmra.mrb[0].mxu0 %v300
    %v381 = vpop.f32.mrb[0].mxu0
    %v382 = vadd.f32 %v285, %v381
    %v383 = vpop.f32.mrb[0].mxu0
    %384 = vmatprep.mubr.f32.mxu0 0.0
    %385 = vmatmul.mubr.f32.gmra.mrb[0].mxu0 %v303
    %v386 = vpop.f32.mrb[0].mxu0
    %v387 = vadd.f32 %v290, %v386
    %v388 = vpop.f32.mrb[0].mxu0
    %389 = vdwg.mxu0
    %v390 = vmax.f32 %v372, 0.0
    %v391 = vmax.f32 %v377, 0.0
    %v392 = vmax.f32 %v382, 0.0
    %v393 = vmax.f32 %v387, 0.0
    %v394 = vld [vmem:[%s5] sm:$0xff]
    %v395 = vld [vmem:[%s5 + $0x8] sm:$0xff]
    %v396 = vld [vmem:[%s6] sm:$0xff]
    %v397 = vld [vmem:[%s6 + $0x8] sm:$0xff]
    %399 = vset.pattern.permute.xlu0 0
    %400 = vperm.xlu0 %399, %v396
    %v401 = vpop.permute.xlu0 %400
    %404 = vset.pattern.permute.xlu0 0
    %405 = vperm.xlu0 %404, %v397
    %v406 = vpop.permute.xlu0 %405
    %vm408 = vcmask 261120
    %v410 = vsel %vm408, %v394, 0
    %v413 = vsel %vm408, %v395, 0
    %415 = vmatprep.subr.mxu0 0.0
    %416 = vmatpush1.msra.mxu0 %v390
    %417 = vmatprep.subr.mxu0 0.0
    %418 = vmatpush1.msra.mxu0 %v391
    %419 = vmatprep.subr.mxu0 0.0
    %420 = vmatpush1.msra.mxu0 %v392
    %421 = vmatprep.subr.mxu0 0.0
    %422 = vmatpush1.msra.mxu0 %v393
    %423 = vmatprep.subr.mxu0 0.0
    %424 = vmatpush1.msra.mxu0 0.0
    %425 = vmatprep.subr.mxu0 0.0
    %426 = vmatpush1.msra.mxu0 0.0
    %427 = vmatprep.subr.mxu0 0.0
    %428 = vmatpush1.msra.mxu0 0.0
    %429 = vmatprep.subr.mxu0 0.0
    %430 = vmatpush1.msra.mxu0 0.0
    %431 = vmatprep.subr.mxu0 0.0
    %432 = vmatpush1.msra.mxu0 0.0
    %433 = vmatprep.subr.mxu0 0.0
    %434 = vmatpush1.msra.mxu0 0.0
    %435 = vmatprep.subr.mxu0 0.0
    %436 = vmatpush1.msra.mxu0 0.0
    %437 = vmatprep.subr.mxu0 0.0
    %438 = vmatpush1.msra.mxu0 0.0
    %439 = vmatprep.subr.mxu0 0.0
    %440 = vmatpush1.msra.mxu0 0.0
    %441 = vmatprep.subr.mxu0 0.0
    %442 = vmatpush1.msra.mxu0 0.0
    %443 = vmatprep.subr.mxu0 0.0
    %444 = vmatpush1.msra.mxu0 0.0
    %445 = vmatprep.subr.mxu0 0.0
    %446 = vmatpush1.msra.mxu0 0.0
    %447 = vmatprep.subr.mxu0 0.0
    %448 = vmatpush1.msra.mxu0 0.0
    %449 = vmatprep.subr.mxu0 0.0
    %450 = vmatpush1.msra.mxu0 0.0
    %451 = vmatprep.subr.mxu0 0.0
    %452 = vmatpush1.msra.mxu0 0.0
    %453 = vmatprep.subr.mxu0 0.0
    %454 = vmatpush1.msra.mxu0 0.0
    %455 = vmatprep.subr.mxu0 0.0
    %456 = vmatpush1.msra.mxu0 0.0
    %457 = vmatprep.subr.mxu0 0.0
    %458 = vmatpush1.msra.mxu0 0.0
    %459 = vmatprep.subr.mxu0 0.0
    %460 = vmatpush1.msra.mxu0 0.0
    %461 = vmatprep.subr.mxu0 0.0
    %462 = vmatpush1.msra.mxu0 0.0
    %463 = vmatprep.subr.mxu0 0.0
    %464 = vmatpush1.msra.mxu0 0.0
    %465 = vmatprep.subr.mxu0 0.0
    %466 = vmatpush1.msra.mxu0 0.0
    %467 = vmatprep.subr.mxu0 0.0
    %468 = vmatpush1.msra.mxu0 0.0
    %469 = vmatprep.subr.mxu0 0.0
    %470 = vmatpush1.msra.mxu0 0.0
    %471 = vmatprep.subr.mxu0 0.0
    %472 = vmatpush1.msra.mxu0 0.0
    %473 = vmatprep.subr.mxu0 0.0
    %474 = vmatpush1.msra.mxu0 0.0
    %475 = vmatprep.subr.mxu0 0.0
    %476 = vmatpush1.msra.mxu0 0.0
    %477 = vmatprep.subr.mxu0 0.0
    %478 = vmatpush1.msra.mxu0 0.0
    %479 = vmatprep.mubr.f32.mxu0 0.0
    %480 = vmatmul.mubr.f32.gmra.mrb[0].mxu0 %v410
    %v481 = vpop.f32.mrb[0].mxu0
    %v482 = vadd.f32 %v401, %v481
    %v483 = vpop.f32.mrb[0].mxu0
    %484 = vmatprep.mubr.f32.mxu0 0.0
    %485 = vmatmul.mubr.f32.gmra.mrb[0].mxu0 %v413
    %v486 = vpop.f32.mrb[0].mxu0
    %v487 = vadd.f32 %v406, %v486
    %v488 = vpop.f32.mrb[0].mxu0
    %489 = vdwg.mxu0
    %v490 = vmax.f32 %v482, 0.0
    %v491 = vmax.f32 %v487, 0.0
    %v492 = vld [vmem:[%s7] sm:$0x1]
    %v493 = vld [vmem:[#allocation2] sm:$0x1]
    %495 = vset.pattern.permute.xlu0 0
    %496 = vperm.xlu0 %495, %v493
    %v497 = vpop.permute.xlu0 %496
    %v499 = vlaneseq
    %v500 = vshrl.u32 %v499, 7
    %v501 = vsub.s32 0, %v500
    %v502 = vrot.slane %v497, %v501
    %vm503 = vcmask 130048
    %v505 = vsel %vm503, %v492, 0
    %507 = vmatprep.subr.mxu0 0.0
    %508 = vmatpush1.msra.mxu0 %v490
    %509 = vmatprep.subr.mxu0 0.0
    %510 = vmatpush1.msra.mxu0 %v491
    %511 = vmatprep.subr.mxu0 0.0
    %512 = vmatpush1.msra.mxu0 0.0
    %513 = vmatprep.subr.mxu0 0.0
    %514 = vmatpush1.msra.mxu0 0.0
    %515 = vmatprep.subr.mxu0 0.0
    %516 = vmatpush1.msra.mxu0 0.0
    %517 = vmatprep.subr.mxu0 0.0
    %518 = vmatpush1.msra.mxu0 0.0
    %519 = vmatprep.subr.mxu0 0.0
    %520 = vmatpush1.msra.mxu0 0.0
    %521 = vmatprep.subr.mxu0 0.0
    %522 = vmatpush1.msra.mxu0 0.0
    %523 = vmatprep.subr.mxu0 0.0
    %524 = vmatpush1.msra.mxu0 0.0
    %525 = vmatprep.subr.mxu0 0.0
    %526 = vmatpush1.msra.mxu0 0.0
    %527 = vmatprep.subr.mxu0 0.0
    %528 = vmatpush1.msra.mxu0 0.0
    %529 = vmatprep.subr.mxu0 0.0
    %530 = vmatpush1.msra.mxu0 0.0
    %531 = vmatprep.subr.mxu0 0.0
    %532 = vmatpush1.msra.mxu0 0.0
    %533 = vmatprep.subr.mxu0 0.0
    %534 = vmatpush1.msra.mxu0 0.0
    %535 = vmatprep.subr.mxu0 0.0
    %536 = vmatpush1.msra.mxu0 0.0
    %537 = vmatprep.subr.mxu0 0.0
    %538 = vmatpush1.msra.mxu0 0.0
    %539 = vmatprep.subr.mxu0 0.0
    %540 = vmatpush1.msra.mxu0 0.0
    %541 = vmatprep.subr.mxu0 0.0
    %542 = vmatpush1.msra.mxu0 0.0
    %543 = vmatprep.subr.mxu0 0.0
    %544 = vmatpush1.msra.mxu0 0.0
    %545 = vmatprep.subr.mxu0 0.0
    %546 = vmatpush1.msra.mxu0 0.0
    %547 = vmatprep.subr.mxu0 0.0
    %548 = vmatpush1.msra.mxu0 0.0
    %549 = vmatprep.subr.mxu0 0.0
    %550 = vmatpush1.msra.mxu0 0.0
    %551 = vmatprep.subr.mxu0 0.0
    %552 = vmatpush1.msra.mxu0 0.0
    %553 = vmatprep.subr.mxu0 0.0
    %554 = vmatpush1.msra.mxu0 0.0
    %555 = vmatprep.subr.mxu0 0.0
    %556 = vmatpush1.msra.mxu0 0.0
    %557 = vmatprep.subr.mxu0 0.0
    %558 = vmatpush1.msra.mxu0 0.0
    %559 = vmatprep.subr.mxu0 0.0
    %560 = vmatpush1.msra.mxu0 0.0
    %561 = vmatprep.subr.mxu0 0.0
    %562 = vmatpush1.msra.mxu0 0.0
    %563 = vmatprep.subr.mxu0 0.0
    %564 = vmatpush1.msra.mxu0 0.0
    %565 = vmatprep.subr.mxu0 0.0
    %566 = vmatpush1.msra.mxu0 0.0
    %567 = vmatprep.subr.mxu0 0.0
    %568 = vmatpush1.msra.mxu0 0.0
    %569 = vmatprep.subr.mxu0 0.0
    %570 = vmatpush1.msra.mxu0 0.0
    %571 = vmatprep.mubr.f32.mxu0 0.0
    %572 = vmatmul.mubr.f32.gmra.mrb[0].mxu0 %v505
    %v573 = vpop.f32.mrb[0].mxu0
    %v574 = vadd.f32 %v502, %v573
    %v575 = vpop.f32.mrb[0].mxu0
    %576 = vdwg.mxu0
    %v577 = vtanh.pop %v574
    %v578 = vmul.f32 %v577, 2.0
    %579 = vst [vmem:[#allocation3] sm:$0x1] %v578
    // Predicated region
    $region38: #{tpu_custom_call.1} parent=1 // pred_check
      _
    $region39: #{tpu_custom_call.1} parent=1 // pred_check_branch
      %581 = sbr.rel (0) target = $region41
    $region40: #{tpu_custom_call.1} parent=1 // pred_region
      %s583 = ssub.s32 16, 16
      %584 = vsyncadd [#allocation4], %s583
      %s586 = sshll.u32 [#allocation3], 4
      %s587 = int_to_ptr.vmem [resolvable:$true] %s586
      %589 = dma.vmem_to_hbm [thread:$0]  %s587, 16, %s9, [#allocation4]
    $region41: #{tpu_custom_call.1} parent=1 // pred_fallthru
      _
    // Predicated region
    $region42: #{tpu_custom_call.1} parent=1 // pred_check
      _
    $region43: #{tpu_custom_call.1} parent=1 // pred_check_branch
      %591 = sbr.rel (0) target = $region45
    $region44: #{tpu_custom_call.1} parent=1 // pred_region
      %592 = dma.done [#allocation4], 16
    $region45: #{tpu_custom_call.1} parent=1 // pred_fallthru
      _
    %593 = vsyncpa [#allocation4], 1

</llo_original>
